<compile_context>
chip_gen: v5e
topology: v5e:2x2
jax: 0.10.0
libtpu: 0.0.40
codegen_flags: <defaults>
</compile_context>

<pallas_src>
from functools import partial

import jax
import jax.numpy as jnp
from jax.experimental import pallas as pl
from jax.experimental.pallas import tpu as pltpu


def _diversity_kernel(x_ref, out_ref, *, num_modes, num_future):
    # x_ref  : VMEM (N, K, D)  trajectories, D = F*C flattened feature axis
    # out_ref: VMEM (1, 128)   scalar loss broadcast across lanes
    x = x_ref[...].astype(jnp.float32)                       # (N, K, D)
    n = x.shape[0]
    # exp( mean_f( sum_c diff^2 ) / 10 ) == exp( sum_d diff^2 / (F * 10) )
    inv = jnp.float32(1.0 / (10.0 * num_future))

    # K is small and static: unroll the pairwise broadcast-subtract, but defer
    # the transcendental / reduce to one batched pass over a (N, K*K) tensor.
    rows = []
    for i in range(num_modes):
        xi = x[:, i:i + 1, :]                                 # (N, 1, D)
        diff = x - xi                                         # (N, K, D)
        rows.append(jnp.sum(diff * diff, axis=-1))            # (N, K) = sum_f sum_c
    d2_all = jnp.concatenate(rows, axis=-1)                    # (N, K*K) lane-dense

    e = jnp.exp(d2_all * inv)                                  # ONE exp pass (EUP)
    # Diagonal terms (i == j) have d2 == 0 exactly -> exp == 1 exactly; instead
    # of masking, subtract K per row (bit-exact equivalent of the ~eye mask).
    per_n = jnp.sum(e, axis=-1, keepdims=True) - jnp.float32(num_modes)   # (N, 1)

    # mean over (K, K) — diagonal zeroed but still counted (matches torch) —
    # then mean over N = B*A.
    loss = jnp.sum(per_n) * jnp.float32(1.0 / (n * num_modes * num_modes))
    out_ref[...] = jnp.full((1, 128), loss, dtype=out_ref.dtype)


def diversity_loss(pred_traj):
    """pred_traj: (B, A, K, F, C) -> scalar diversity loss (forward only)."""
    B, A, K, F, C = pred_traj.shape
    N, D = B * A, F * C
    # Keep the native dtype — the up-cast to f32 happens inside the kernel.
    x = pred_traj.reshape(N, K, D)                             # (b a) k (f c)

    out = pl.pallas_call(
        partial(_diversity_kernel, num_modes=K, num_future=F),
        out_shape=jax.ShapeDtypeStruct((1, 128), jnp.float32),
        in_specs=[pl.BlockSpec(memory_space=pltpu.MemorySpace.VMEM)],
        out_specs=pl.BlockSpec(memory_space=pltpu.MemorySpace.VMEM),
    )(x)
    return out[0, 0]

    # NOTE: if N = B*A ever scales, tile N with block (TN, K, D), TN a multiple
    # of 8, grid (cdiv(N, TN),) marked "parallel", and an accumulator scratch
    # with pl.when init/finalize; size TN against the per-chip scoped-VMEM
    # limit (16 MiB v5e default, 32 MiB v6e/v7x).


if __name__ == "__main__":
    key = jax.random.PRNGKey(0)
    # b=2 scenes, a=4 agents, k=6 predicted modes, f=12 future steps, c=2 coords
    B, A, K, F, C = 2, 4, 6, 12, 2
    pred_traj = jax.random.normal(key, (B, A, K, F, C), dtype=jnp.float32)

    # TODO(synk): the PyTorch `gpu_num` argument is only a torch device used to
    # build the eye mask; it has no Pallas equivalent and is intentionally
    # dropped (the diagonal is handled analytically: exp(0) == 1 -> subtract K).
    loss = diversity_loss(pred_traj)
    jax.block_until_ready(loss)
    print("KERNEL_OK")
</pallas_src>

<mosaic_0001>
module attributes {stable_mosaic.version = 11 : i64} {
  func.func @_diversity_kernel(%arg0: memref<8x6x24xf32, #tpu.memory_space<vmem>>, %arg1: memref<1x128xf32, #tpu.memory_space<vmem>>) attributes {dimension_semantics = [], scalar_prefetch = 0 : i64, scratch_operands = 0 : i64, tpu.core_type = #tpu.core_type<tc>} {
    %c0 = arith.constant 0 : index
    %c0_0 = arith.constant 0 : index
    %c0_1 = arith.constant 0 : index
    %0 = vector.load %arg0[%c0, %c0_0, %c0_1] : memref<8x6x24xf32, #tpu.memory_space<vmem>>, vector<8x6x24xf32>
    %1 = vector.extract_strided_slice %0 {offsets = [0, 0, 0], sizes = [8, 1, 24], strides = [1, 1, 1]} : vector<8x6x24xf32> to vector<8x1x24xf32>
    %2 = vector.broadcast %1 : vector<8x1x24xf32> to vector<8x6x24xf32>
    %3 = arith.subf %0, %2 : vector<8x6x24xf32>
    %4 = arith.mulf %3, %3 : vector<8x6x24xf32>
    %cst = arith.constant dense<0.000000e+00> : vector<8x6xf32>
    %5 = vector.multi_reduction <add>, %4, %cst [2] : vector<8x6x24xf32> to vector<8x6xf32>
    %6 = vector.extract_strided_slice %0 {offsets = [0, 1, 0], sizes = [8, 1, 24], strides = [1, 1, 1]} : vector<8x6x24xf32> to vector<8x1x24xf32>
    %7 = vector.broadcast %6 : vector<8x1x24xf32> to vector<8x6x24xf32>
    %8 = arith.subf %0, %7 : vector<8x6x24xf32>
    %9 = arith.mulf %8, %8 : vector<8x6x24xf32>
    %cst_2 = arith.constant dense<0.000000e+00> : vector<8x6xf32>
    %10 = vector.multi_reduction <add>, %9, %cst_2 [2] : vector<8x6x24xf32> to vector<8x6xf32>
    %11 = vector.extract_strided_slice %0 {offsets = [0, 2, 0], sizes = [8, 1, 24], strides = [1, 1, 1]} : vector<8x6x24xf32> to vector<8x1x24xf32>
    %12 = vector.broadcast %11 : vector<8x1x24xf32> to vector<8x6x24xf32>
    %13 = arith.subf %0, %12 : vector<8x6x24xf32>
    %14 = arith.mulf %13, %13 : vector<8x6x24xf32>
    %cst_3 = arith.constant dense<0.000000e+00> : vector<8x6xf32>
    %15 = vector.multi_reduction <add>, %14, %cst_3 [2] : vector<8x6x24xf32> to vector<8x6xf32>
    %16 = vector.extract_strided_slice %0 {offsets = [0, 3, 0], sizes = [8, 1, 24], strides = [1, 1, 1]} : vector<8x6x24xf32> to vector<8x1x24xf32>
    %17 = vector.broadcast %16 : vector<8x1x24xf32> to vector<8x6x24xf32>
    %18 = arith.subf %0, %17 : vector<8x6x24xf32>
    %19 = arith.mulf %18, %18 : vector<8x6x24xf32>
    %cst_4 = arith.constant dense<0.000000e+00> : vector<8x6xf32>
    %20 = vector.multi_reduction <add>, %19, %cst_4 [2] : vector<8x6x24xf32> to vector<8x6xf32>
    %21 = vector.extract_strided_slice %0 {offsets = [0, 4, 0], sizes = [8, 1, 24], strides = [1, 1, 1]} : vector<8x6x24xf32> to vector<8x1x24xf32>
    %22 = vector.broadcast %21 : vector<8x1x24xf32> to vector<8x6x24xf32>
    %23 = arith.subf %0, %22 : vector<8x6x24xf32>
    %24 = arith.mulf %23, %23 : vector<8x6x24xf32>
    %cst_5 = arith.constant dense<0.000000e+00> : vector<8x6xf32>
    %25 = vector.multi_reduction <add>, %24, %cst_5 [2] : vector<8x6x24xf32> to vector<8x6xf32>
    %26 = vector.extract_strided_slice %0 {offsets = [0, 5, 0], sizes = [8, 1, 24], strides = [1, 1, 1]} : vector<8x6x24xf32> to vector<8x1x24xf32>
    %27 = vector.broadcast %26 : vector<8x1x24xf32> to vector<8x6x24xf32>
    %28 = arith.subf %0, %27 : vector<8x6x24xf32>
    %29 = arith.mulf %28, %28 : vector<8x6x24xf32>
    %cst_6 = arith.constant dense<0.000000e+00> : vector<8x6xf32>
    %30 = vector.multi_reduction <add>, %29, %cst_6 [2] : vector<8x6x24xf32> to vector<8x6xf32>
    %31 = tpu.concatenate %5, %10, %15, %20, %25, %30 in 1 : vector<8x6xf32>, vector<8x6xf32>, vector<8x6xf32>, vector<8x6xf32>, vector<8x6xf32>, vector<8x6xf32> -> vector<8x36xf32>
    %cst_7 = arith.constant 0.00833333377 : f32
    %32 = vector.broadcast %cst_7 : f32 to vector<8x36xf32>
    %33 = arith.mulf %31, %32 : vector<8x36xf32>
    %34 = math.exp %33 : vector<8x36xf32>
    %cst_8 = arith.constant dense<0.000000e+00> : vector<8xf32>
    %35 = vector.multi_reduction <add>, %34, %cst_8 [1] : vector<8x36xf32> to vector<8xf32>
    %36 = vector.shape_cast %35 : vector<8xf32> to vector<8x1xf32>
    %cst_9 = arith.constant 6.000000e+00 : f32
    %37 = vector.broadcast %cst_9 : f32 to vector<8x1xf32>
    %38 = arith.subf %36, %37 : vector<8x1xf32>
    %39 = vector.shape_cast %38 : vector<8x1xf32> to vector<1x8x1xf32>
    %cst_10 = arith.constant dense<0.000000e+00> : vector<1xf32>
    %40 = vector.multi_reduction <add>, %39, %cst_10 [1, 2] : vector<1x8x1xf32> to vector<1xf32>
    %41 = vector.shape_cast %40 : vector<1xf32> to vector<1x1x1xf32>
    %42 = vector.extract %41[0, 0, 0] : f32 from vector<1x1x1xf32>
    %cst_11 = arith.constant 0.00347222225 : f32
    %43 = arith.mulf %42, %cst_11 : f32
    %44 = vector.broadcast %43 : f32 to vector<1x128xf32>
    %c0_12 = arith.constant 0 : index
    %c0_13 = arith.constant 0 : index
    %45 = vector.load %arg1[%c0_12, %c0_13] : memref<1x128xf32, #tpu.memory_space<vmem>>, vector<1x128xf32>
    tpu.vector_store %arg1[%c0_12, %c0_13], %44 {strides = array<i32>} : memref<1x128xf32, #tpu.memory_space<vmem>>, vector<1x128xf32>,
    return
  }
}

</mosaic_0001>

<llo_original>
// kernel: tpu_custom_call.1
$region0: #{tpu_custom_call.1}
  #allocation0 [shape = 'u32[]', space=smem, size = 0x4, offset = 0x4, fixed_abs, tag = 'smem constant byte address 0x4 - core index']
  #allocation1 [shape = 'u32[72,128]{1,0:T(1,128)}', space=vmem, size = 0x9000, scoped, tag = 'internal scratch']
  %s0 = inlined_call_operand.vmem [shape: f32[8,6,24], index: 0, kind: input, shape index: {}]
  %s1 = inlined_call_operand.hbm [shape: f32[1,128], index: 1, kind: output, shape index: {}]
  %s2 = sld [smem:[#allocation0]]
  $region14: #{tpu_custom_call.1} parent=0
    _
  %s4 = ssub.s32 1, %s2
  %s5 = scalar_select 0, %s4, %s2
  $region1: #{tpu_custom_call.1} parent=0
    #allocation2 [shape = 'u8[512]{0}', space=vmem, size = 0x400, scoped, tag = 'output window, operand 0, single buffered']
    #allocation3 [shape = 's32[1]{0}', space=sflag, size = 0x4, scoped, tag = 'scoped memory for tpu_custom_call.1']
    %6 = vsyncpa [#allocation3], 0
    // Predicated region
    $region2: #{tpu_custom_call.1} parent=1 // pred_check
      _
    $region3: #{tpu_custom_call.1} parent=1 // pred_check_branch
      %8 = sbr.rel (0) target = $region5
    $region4: #{tpu_custom_call.1} parent=1 // pred_region
      _
    $region5: #{tpu_custom_call.1} parent=1 // pred_fallthru
      _
    %v9 = vld [vmem:[%s0] sm:$0x3f]
    %v10 = vld [vmem:[%s0 + $0x8] sm:$0x3f]
    %v11 = vld [vmem:[%s0 + $0x10] sm:$0x3f]
    %v12 = vld [vmem:[%s0 + $0x18] sm:$0x3f]
    %v13 = vld [vmem:[%s0 + $0x20] sm:$0x3f]
    %v14 = vld [vmem:[%s0 + $0x28] sm:$0x3f]
    %v15 = vld [vmem:[%s0 + $0x30] sm:$0x3f]
    %v16 = vld [vmem:[%s0 + $0x38] sm:$0x3f]
    %v17 = vperm.slane %v9, 0
    %v18 = vperm.slane %v10, 0
    %v19 = vperm.slane %v11, 0
    %v20 = vperm.slane %v12, 0
    %v21 = vperm.slane %v13, 0
    %v22 = vperm.slane %v14, 0
    %v23 = vperm.slane %v15, 0
    %v24 = vperm.slane %v16, 0
    %v25 = vsub.f32 %v9, %v17
    %v26 = vsub.f32 %v10, %v18
    %v27 = vsub.f32 %v11, %v19
    %v28 = vsub.f32 %v12, %v20
    %v29 = vsub.f32 %v13, %v21
    %v30 = vsub.f32 %v14, %v22
    %v31 = vsub.f32 %v15, %v23
    %v32 = vsub.f32 %v16, %v24
    %v33 = vmul.f32 %v25, %v25
    %v34 = vmul.f32 %v26, %v26
    %v35 = vmul.f32 %v27, %v27
    %v36 = vmul.f32 %v28, %v28
    %v37 = vmul.f32 %v29, %v29
    %v38 = vmul.f32 %v30, %v30
    %v39 = vmul.f32 %v31, %v31
    %v40 = vmul.f32 %v32, %v32
    %vm41 = vcmask 193536
    %v42 = vsel %vm41, %v33, 0.0
    %43 = vadd.xlane.f32.xlu0 %v42
    %v44 = vpop.xlane.xlu0 %43
    %v45 = vsel %vm41, %v34, 0.0
    %46 = vadd.xlane.f32.xlu0 %v45
    %v47 = vpop.xlane.xlu0 %46
    %v48 = vsel %vm41, %v35, 0.0
    %49 = vadd.xlane.f32.xlu0 %v48
    %v50 = vpop.xlane.xlu0 %49
    %v51 = vsel %vm41, %v36, 0.0
    %52 = vadd.xlane.f32.xlu0 %v51
    %v53 = vpop.xlane.xlu0 %52
    %v54 = vsel %vm41, %v37, 0.0
    %55 = vadd.xlane.f32.xlu0 %v54
    %v56 = vpop.xlane.xlu0 %55
    %v57 = vsel %vm41, %v38, 0.0
    %58 = vadd.xlane.f32.xlu0 %v57
    %v59 = vpop.xlane.xlu0 %58
    %v60 = vsel %vm41, %v39, 0.0
    %61 = vadd.xlane.f32.xlu0 %v60
    %v62 = vpop.xlane.xlu0 %61
    %v63 = vsel %vm41, %v40, 0.0
    %64 = vadd.xlane.f32.xlu0 %v63
    %v65 = vpop.xlane.xlu0 %64
    %v66 = vperm.slane %v9, 1
    %v67 = vperm.slane %v10, 1
    %v68 = vperm.slane %v11, 1
    %v69 = vperm.slane %v12, 1
    %v70 = vperm.slane %v13, 1
    %v71 = vperm.slane %v14, 1
    %v72 = vperm.slane %v15, 1
    %v73 = vperm.slane %v16, 1
    %v74 = vsub.f32 %v9, %v66
    %v75 = vsub.f32 %v10, %v67
    %v76 = vsub.f32 %v11, %v68
    %v77 = vsub.f32 %v12, %v69
    %v78 = vsub.f32 %v13, %v70
    %v79 = vsub.f32 %v14, %v71
    %v80 = vsub.f32 %v15, %v72
    %v81 = vsub.f32 %v16, %v73
    %v82 = vmul.f32 %v74, %v74
    %v83 = vmul.f32 %v75, %v75
    %v84 = vmul.f32 %v76, %v76
    %v85 = vmul.f32 %v77, %v77
    %v86 = vmul.f32 %v78, %v78
    %v87 = vmul.f32 %v79, %v79
    %v88 = vmul.f32 %v80, %v80
    %v89 = vmul.f32 %v81, %v81
    %v90 = vsel %vm41, %v82, 0.0
    %91 = vadd.xlane.f32.xlu0 %v90
    %v92 = vpop.xlane.xlu0 %91
    %v93 = vsel %vm41, %v83, 0.0
    %94 = vadd.xlane.f32.xlu0 %v93
    %v95 = vpop.xlane.xlu0 %94
    %v96 = vsel %vm41, %v84, 0.0
    %97 = vadd.xlane.f32.xlu0 %v96
    %v98 = vpop.xlane.xlu0 %97
    %v99 = vsel %vm41, %v85, 0.0
    %100 = vadd.xlane.f32.xlu0 %v99
    %v101 = vpop.xlane.xlu0 %100
    %v102 = vsel %vm41, %v86, 0.0
    %103 = vadd.xlane.f32.xlu0 %v102
    %v104 = vpop.xlane.xlu0 %103
    %v105 = vsel %vm41, %v87, 0.0
    %106 = vadd.xlane.f32.xlu0 %v105
    %v107 = vpop.xlane.xlu0 %106
    %v108 = vsel %vm41, %v88, 0.0
    %109 = vadd.xlane.f32.xlu0 %v108
    %v110 = vpop.xlane.xlu0 %109
    %v111 = vsel %vm41, %v89, 0.0
    %112 = vadd.xlane.f32.xlu0 %v111
    %v113 = vpop.xlane.xlu0 %112
    %v114 = vperm.slane %v9, 2
    %v115 = vperm.slane %v10, 2
    %v116 = vperm.slane %v11, 2
    %v117 = vperm.slane %v12, 2
    %v118 = vperm.slane %v13, 2
    %v119 = vperm.slane %v14, 2
    %v120 = vperm.slane %v15, 2
    %v121 = vperm.slane %v16, 2
    %v122 = vsub.f32 %v9, %v114
    %v123 = vsub.f32 %v10, %v115
    %v124 = vsub.f32 %v11, %v116
    %v125 = vsub.f32 %v12, %v117
    %v126 = vsub.f32 %v13, %v118
    %v127 = vsub.f32 %v14, %v119
    %v128 = vsub.f32 %v15, %v120
    %v129 = vsub.f32 %v16, %v121
    %v130 = vmul.f32 %v122, %v122
    %v131 = vmul.f32 %v123, %v123
    %v132 = vmul.f32 %v124, %v124
    %v133 = vmul.f32 %v125, %v125
    %v134 = vmul.f32 %v126, %v126
    %v135 = vmul.f32 %v127, %v127
    %v136 = vmul.f32 %v128, %v128
    %v137 = vmul.f32 %v129, %v129
    %v138 = vsel %vm41, %v130, 0.0
    %139 = vadd.xlane.f32.xlu0 %v138
    %v140 = vpop.xlane.xlu0 %139
    %v141 = vsel %vm41, %v131, 0.0
    %142 = vadd.xlane.f32.xlu0 %v141
    %v143 = vpop.xlane.xlu0 %142
    %v144 = vsel %vm41, %v132, 0.0
    %145 = vadd.xlane.f32.xlu0 %v144
    %v146 = vpop.xlane.xlu0 %145
    %v147 = vsel %vm41, %v133, 0.0
    %148 = vadd.xlane.f32.xlu0 %v147
    %v149 = vpop.xlane.xlu0 %148
    %v150 = vsel %vm41, %v134, 0.0
    %151 = vadd.xlane.f32.xlu0 %v150
    %v152 = vpop.xlane.xlu0 %151
    %v153 = vsel %vm41, %v135, 0.0
    %154 = vadd.xlane.f32.xlu0 %v153
    %v155 = vpop.xlane.xlu0 %154
    %v156 = vsel %vm41, %v136, 0.0
    %157 = vadd.xlane.f32.xlu0 %v156
    %v158 = vpop.xlane.xlu0 %157
    %v159 = vsel %vm41, %v137, 0.0
    %160 = vadd.xlane.f32.xlu0 %v159
    %v161 = vpop.xlane.xlu0 %160
    %v162 = vperm.slane %v9, 3
    %v163 = vperm.slane %v10, 3
    %v164 = vperm.slane %v11, 3
    %v165 = vperm.slane %v12, 3
    %v166 = vperm.slane %v13, 3
    %v167 = vperm.slane %v14, 3
    %v168 = vperm.slane %v15, 3
    %v169 = vperm.slane %v16, 3
    %v170 = vsub.f32 %v9, %v162
    %v171 = vsub.f32 %v10, %v163
    %v172 = vsub.f32 %v11, %v164
    %v173 = vsub.f32 %v12, %v165
    %v174 = vsub.f32 %v13, %v166
    %v175 = vsub.f32 %v14, %v167
    %v176 = vsub.f32 %v15, %v168
    %v177 = vsub.f32 %v16, %v169
    %v178 = vmul.f32 %v170, %v170
    %v179 = vmul.f32 %v171, %v171
    %v180 = vmul.f32 %v172, %v172
    %v181 = vmul.f32 %v173, %v173
    %v182 = vmul.f32 %v174, %v174
    %v183 = vmul.f32 %v175, %v175
    %v184 = vmul.f32 %v176, %v176
    %v185 = vmul.f32 %v177, %v177
    %v186 = vsel %vm41, %v178, 0.0
    %187 = vadd.xlane.f32.xlu0 %v186
    %v188 = vpop.xlane.xlu0 %187
    %v189 = vsel %vm41, %v179, 0.0
    %190 = vadd.xlane.f32.xlu0 %v189
    %v191 = vpop.xlane.xlu0 %190
    %v192 = vsel %vm41, %v180, 0.0
    %193 = vadd.xlane.f32.xlu0 %v192
    %v194 = vpop.xlane.xlu0 %193
    %v195 = vsel %vm41, %v181, 0.0
    %196 = vadd.xlane.f32.xlu0 %v195
    %v197 = vpop.xlane.xlu0 %196
    %v198 = vsel %vm41, %v182, 0.0
    %199 = vadd.xlane.f32.xlu0 %v198
    %v200 = vpop.xlane.xlu0 %199
    %v201 = vsel %vm41, %v183, 0.0
    %202 = vadd.xlane.f32.xlu0 %v201
    %v203 = vpop.xlane.xlu0 %202
    %v204 = vsel %vm41, %v184, 0.0
    %205 = vadd.xlane.f32.xlu0 %v204
    %v206 = vpop.xlane.xlu0 %205
    %v207 = vsel %vm41, %v185, 0.0
    %208 = vadd.xlane.f32.xlu0 %v207
    %v209 = vpop.xlane.xlu0 %208
    %v210 = vperm.slane %v9, 4
    %v211 = vperm.slane %v10, 4
    %v212 = vperm.slane %v11, 4
    %v213 = vperm.slane %v12, 4
    %v214 = vperm.slane %v13, 4
    %v215 = vperm.slane %v14, 4
    %v216 = vperm.slane %v15, 4
    %v217 = vperm.slane %v16, 4
    %v218 = vsub.f32 %v9, %v210
    %v219 = vsub.f32 %v10, %v211
    %v220 = vsub.f32 %v11, %v212
    %v221 = vsub.f32 %v12, %v213
    %v222 = vsub.f32 %v13, %v214
    %v223 = vsub.f32 %v14, %v215
    %v224 = vsub.f32 %v15, %v216
    %v225 = vsub.f32 %v16, %v217
    %v226 = vmul.f32 %v218, %v218
    %v227 = vmul.f32 %v219, %v219
    %v228 = vmul.f32 %v220, %v220
    %v229 = vmul.f32 %v221, %v221
    %v230 = vmul.f32 %v222, %v222
    %v231 = vmul.f32 %v223, %v223
    %v232 = vmul.f32 %v224, %v224
    %v233 = vmul.f32 %v225, %v225
    %v234 = vsel %vm41, %v226, 0.0
    %235 = vadd.xlane.f32.xlu0 %v234
    %v236 = vpop.xlane.xlu0 %235
    %v237 = vsel %vm41, %v227, 0.0
    %238 = vadd.xlane.f32.xlu0 %v237
    %v239 = vpop.xlane.xlu0 %238
    %v240 = vsel %vm41, %v228, 0.0
    %241 = vadd.xlane.f32.xlu0 %v240
    %v242 = vpop.xlane.xlu0 %241
    %v243 = vsel %vm41, %v229, 0.0
    %244 = vadd.xlane.f32.xlu0 %v243
    %v245 = vpop.xlane.xlu0 %244
    %v246 = vsel %vm41, %v230, 0.0
    %247 = vadd.xlane.f32.xlu0 %v246
    %v248 = vpop.xlane.xlu0 %247
    %v249 = vsel %vm41, %v231, 0.0
    %250 = vadd.xlane.f32.xlu0 %v249
    %v251 = vpop.xlane.xlu0 %250
    %v252 = vsel %vm41, %v232, 0.0
    %253 = vadd.xlane.f32.xlu0 %v252
    %v254 = vpop.xlane.xlu0 %253
    %v255 = vsel %vm41, %v233, 0.0
    %256 = vadd.xlane.f32.xlu0 %v255
    %v257 = vpop.xlane.xlu0 %256
    %v258 = vperm.slane %v9, 5
    %v259 = vperm.slane %v10, 5
    %v260 = vperm.slane %v11, 5
    %v261 = vperm.slane %v12, 5
    %v262 = vperm.slane %v13, 5
    %v263 = vperm.slane %v14, 5
    %v264 = vperm.slane %v15, 5
    %v265 = vperm.slane %v16, 5
    %v266 = vsub.f32 %v9, %v258
    %v267 = vsub.f32 %v10, %v259
    %v268 = vsub.f32 %v11, %v260
    %v269 = vsub.f32 %v12, %v261
    %v270 = vsub.f32 %v13, %v262
    %v271 = vsub.f32 %v14, %v263
    %v272 = vsub.f32 %v15, %v264
    %v273 = vsub.f32 %v16, %v265
    %v274 = vmul.f32 %v266, %v266
    %v275 = vmul.f32 %v267, %v267
    %v276 = vmul.f32 %v268, %v268
    %v277 = vmul.f32 %v269, %v269
    %v278 = vmul.f32 %v270, %v270
    %v279 = vmul.f32 %v271, %v271
    %v280 = vmul.f32 %v272, %v272
    %v281 = vmul.f32 %v273, %v273
    %v282 = vsel %vm41, %v274, 0.0
    %283 = vadd.xlane.f32.xlu0 %v282
    %v284 = vpop.xlane.xlu0 %283
    %v285 = vsel %vm41, %v275, 0.0
    %286 = vadd.xlane.f32.xlu0 %v285
    %v287 = vpop.xlane.xlu0 %286
    %v288 = vsel %vm41, %v276, 0.0
    %289 = vadd.xlane.f32.xlu0 %v288
    %v290 = vpop.xlane.xlu0 %289
    %v291 = vsel %vm41, %v277, 0.0
    %292 = vadd.xlane.f32.xlu0 %v291
    %v293 = vpop.xlane.xlu0 %292
    %v294 = vsel %vm41, %v278, 0.0
    %295 = vadd.xlane.f32.xlu0 %v294
    %v296 = vpop.xlane.xlu0 %295
    %v297 = vsel %vm41, %v279, 0.0
    %298 = vadd.xlane.f32.xlu0 %v297
    %v299 = vpop.xlane.xlu0 %298
    %v300 = vsel %vm41, %v280, 0.0
    %301 = vadd.xlane.f32.xlu0 %v300
    %v302 = vpop.xlane.xlu0 %301
    %v303 = vsel %vm41, %v281, 0.0
    %304 = vadd.xlane.f32.xlu0 %v303
    %v305 = vpop.xlane.xlu0 %304
    %v314 = vlaneseq
    %v315 = vand.u32 %v314, 127
    %v316 = vperm.slane %v44, %v315
    %v317 = vperm.slane %v47, %v315
    %v318 = vperm.slane %v50, %v315
    %v319 = vperm.slane %v53, %v315
    %v320 = vperm.slane %v56, %v315
    %v321 = vperm.slane %v59, %v315
    %v322 = vperm.slane %v62, %v315
    %v323 = vperm.slane %v65, %v315
    %vm324 = vcmask 1041409
    %v325 = vsel %vm324, %v317, %v316
    %vm326 = vcmask 1042434
    %v327 = vsel %vm326, %v318, %v325
    %vm328 = vcmask 1043459
    %v329 = vsel %vm328, %v319, %v327
    %vm330 = vcmask 1044484
    %v331 = vsel %vm330, %v320, %v329
    %vm332 = vcmask 1045509
    %v333 = vsel %vm332, %v321, %v331
    %vm334 = vcmask 1046534
    %v335 = vsel %vm334, %v322, %v333
    %vm336 = vcmask 1047559
    %v337 = vsel %vm336, %v323, %v335
    %v347 = vadd.s32 %v315, 4294967290
    %v348 = vperm.slane %v92, %v347
    %v349 = vperm.slane %v95, %v347
    %v350 = vperm.slane %v98, %v347
    %v351 = vperm.slane %v101, %v347
    %v352 = vperm.slane %v104, %v347
    %v353 = vperm.slane %v107, %v347
    %v354 = vperm.slane %v110, %v347
    %v355 = vperm.slane %v113, %v347
    %v356 = vsel %vm324, %v349, %v348
    %v357 = vsel %vm326, %v350, %v356
    %v358 = vsel %vm328, %v351, %v357
    %v359 = vsel %vm330, %v352, %v358
    %v360 = vsel %vm332, %v353, %v359
    %v361 = vsel %vm334, %v354, %v360
    %v362 = vsel %vm336, %v355, %v361
    %v372 = vadd.s32 %v315, 4294967284
    %v373 = vperm.slane %v140, %v372
    %v374 = vperm.slane %v143, %v372
    %v375 = vperm.slane %v146, %v372
    %v376 = vperm.slane %v149, %v372
    %v377 = vperm.slane %v152, %v372
    %v378 = vperm.slane %v155, %v372
    %v379 = vperm.slane %v158, %v372
    %v380 = vperm.slane %v161, %v372
    %v381 = vsel %vm324, %v374, %v373
    %v382 = vsel %vm326, %v375, %v381
    %v383 = vsel %vm328, %v376, %v382
    %v384 = vsel %vm330, %v377, %v383
    %v385 = vsel %vm332, %v378, %v384
    %v386 = vsel %vm334, %v379, %v385
    %v387 = vsel %vm336, %v380, %v386
    %v397 = vadd.s32 %v315, 4294967278
    %v398 = vperm.slane %v188, %v397
    %v399 = vperm.slane %v191, %v397
    %v400 = vperm.slane %v194, %v397
    %v401 = vperm.slane %v197, %v397
    %v402 = vperm.slane %v200, %v397
    %v403 = vperm.slane %v203, %v397
    %v404 = vperm.slane %v206, %v397
    %v405 = vperm.slane %v209, %v397
    %v406 = vsel %vm324, %v399, %v398
    %v407 = vsel %vm326, %v400, %v406
    %v408 = vsel %vm328, %v401, %v407
    %v409 = vsel %vm330, %v402, %v408
    %v410 = vsel %vm332, %v403, %v409
    %v411 = vsel %vm334, %v404, %v410
    %v412 = vsel %vm336, %v405, %v411
    %v422 = vadd.s32 %v315, 4294967272
    %v423 = vperm.slane %v236, %v422
    %v424 = vperm.slane %v239, %v422
    %v425 = vperm.slane %v242, %v422
    %v426 = vperm.slane %v245, %v422
    %v427 = vperm.slane %v248, %v422
    %v428 = vperm.slane %v251, %v422
    %v429 = vperm.slane %v254, %v422
    %v430 = vperm.slane %v257, %v422
    %v431 = vsel %vm324, %v424, %v423
    %v432 = vsel %vm326, %v425, %v431
    %v433 = vsel %vm328, %v426, %v432
    %v434 = vsel %vm330, %v427, %v433
    %v435 = vsel %vm332, %v428, %v434
    %v436 = vsel %vm334, %v429, %v435
    %v437 = vsel %vm336, %v430, %v436
    %v447 = vadd.s32 %v315, 4294967266
    %v448 = vperm.slane %v284, %v447
    %v449 = vperm.slane %v287, %v447
    %v450 = vperm.slane %v290, %v447
    %v451 = vperm.slane %v293, %v447
    %v452 = vperm.slane %v296, %v447
    %v453 = vperm.slane %v299, %v447
    %v454 = vperm.slane %v302, %v447
    %v455 = vperm.slane %v305, %v447
    %v456 = vsel %vm324, %v449, %v448
    %v457 = vsel %vm326, %v450, %v456
    %v458 = vsel %vm328, %v451, %v457
    %v459 = vsel %vm330, %v452, %v458
    %v460 = vsel %vm332, %v453, %v459
    %v461 = vsel %vm334, %v454, %v460
    %v462 = vsel %vm336, %v455, %v461
    %vm464 = vcmask 48128
    %v465 = vsel %vm464, %v337, %v362
    %vm466 = vcmask 97280
    %v467 = vsel %vm466, %v465, %v387
    %vm468 = vcmask 146432
    %v469 = vsel %vm468, %v467, %v412
    %vm470 = vcmask 195584
    %v471 = vsel %vm470, %v469, %v437
    %vm472 = vcmask 244736
    %v473 = vsel %vm472, %v471, %v462
    %v474 = vmul.f32 %v473, 0.008333334
    %v475 = vmul.f32 %v474, 1.442695
    %v476 = vpow.pop %v475
    %vm477 = vcmask 293888
    %v478 = vsel %vm477, %v476, 0.0
    %479 = vadd.xlane.f32.xlu0 %v478
    %v480 = vpop.xlane.xlu0 %479
    %v481 = vsub.f32 %v480, 6.0
    %vm482 = vcmask 7168
    %v483 = vsel %vm482, %v481, 0.0
    %484 = vadd.xlane.f32.xlu0 %v483
    %v485 = vpop.xlane.xlu0 %484
    %v486 = vrot.slane %v485, 4
    %v487 = vadd.f32 %v485, %v486
    %v488 = vrot.slane %v487, 2
    %v489 = vadd.f32 %v487, %v488
    %v490 = vrot.slane %v489, 1
    %v491 = vadd.f32 %v489, %v490
    %s492 = vtos %v491
    %s493 = smul.f32 %s492, 0.0034722222
    %v494 = vstv %s493
    %495 = vst [vmem:[#allocation2] sm:$0x1] %v494
    // Predicated region
    $region6: #{tpu_custom_call.1} parent=1 // pred_check
      _
    $region7: #{tpu_custom_call.1} parent=1 // pred_check_branch
      %497 = sbr.rel (0) target = $region9
    $region8: #{tpu_custom_call.1} parent=1 // pred_region
      %499 = vsyncadd [#allocation3], 0
      %s501 = sshll.u32 [#allocation2], 4
      %s502 = int_to_ptr.vmem [resolvable:$true] %s501
      %s503 = sshll.u32 %s1, 4
      %s504 = int_to_ptr.hbm [resolvable:$true] %s503
      %506 = dma.vmem_to_hbm [thread:$0]  %s502, 16, %s504, [#allocation3]
    $region9: #{tpu_custom_call.1} parent=1 // pred_fallthru
      _
    // Predicated region
    $region10: #{tpu_custom_call.1} parent=1 // pred_check
      _
    $region11: #{tpu_custom_call.1} parent=1 // pred_check_branch
      %508 = sbr.rel (0) target = $region13
    $region12: #{tpu_custom_call.1} parent=1 // pred_region
      %510 = dma.done [#allocation3], 16
    $region13: #{tpu_custom_call.1} parent=1 // pred_fallthru
      _
    %511 = vsyncpa [#allocation3], 1

</llo_original>
